<compile_context>
chip_gen: v7x
topology: tpu7x:2x2x1
jax: 0.10.0
libtpu: 0.0.40
codegen_flags: <defaults>
</compile_context>

<pallas_src>
import numpy as np
import jax
import jax.numpy as jnp
from jax import lax
from jax.experimental import pallas as pl
from jax.experimental.pallas import tpu as pltpu

# ---------------------------------------------------------------------------
# Static configuration (mirrors the code generated in __init__).
# ---------------------------------------------------------------------------
DIM_IN1 = 16
DIM_IN2 = 16
DIM_OUT = 16
NWEIGHT = 320

_SQ3 = 3.0 ** 0.5
_SQ6 = 6.0 ** 0.5

# Real-basis Wigner 3j for l <= 1 (Frobenius-norm 1), then scaled by
# sqrt(2*l_out + 1) for normalization='component'.
_C000 = np.ones((1, 1, 1), np.float32)                       # (l_out,l1,l2)=(0,0,0)
_C101 = (np.eye(3, dtype=np.float32)[:, None, :] / _SQ3)     # (1,0,1): d_{kj}/sqrt3
_C110 = (np.eye(3, dtype=np.float32)[:, :, None] / _SQ3)     # (1,1,0): d_{ki}/sqrt3
_C011 = (np.eye(3, dtype=np.float32)[None, :, :] / _SQ3)     # (0,1,1): d_{ij}/sqrt3
_eps = np.zeros((3, 3, 3), np.float32)
for _a, _b, _c in [(0, 1, 2), (1, 2, 0), (2, 0, 1)]:
    _eps[_a, _b, _c] = 1.0
    _eps[_a, _c, _b] = -1.0
_C111 = _eps / _SQ6                                           # (1,1,1): eps/sqrt6
# TODO(synk): signs of the (1,1,1) coefficient follow the Levi-Civita
# convention; e3nn's exact real-basis sign convention is not reproduced here.

# Each path: x1 slice (start, mul, 2l+1), x2 slice, out slice, weight offset,
# and the normalization-scaled 3j tensor C of shape (2l_out+1, 2l1+1, 2l2+1).
PATHS = [
    dict(x1=(0, 4, 1), x2=(0, 4, 1), out=(0, 4, 1), w=0,   C=_C000 * 1.0),
    dict(x1=(0, 4, 1), x2=(4, 4, 3), out=(4, 4, 3), w=64,  C=_C101 * _SQ3),
    dict(x1=(4, 4, 3), x2=(0, 4, 1), out=(4, 4, 3), w=128, C=_C110 * _SQ3),
    dict(x1=(4, 4, 3), x2=(4, 4, 3), out=(0, 4, 1), w=192, C=_C011 * 1.0),
    dict(x1=(4, 4, 3), x2=(4, 4, 3), out=(4, 4, 3), w=256, C=_C111 * _SQ3),
]

# Per-output-element path count -> 1/sqrt(count) normalization (the generated
# torch code's trailing .div_(count**0.5) blocks).
_count = np.zeros(DIM_OUT)
for _p in PATHS:
    _ao, _mo, _do = _p["out"]
    _count[_ao:_ao + _mo * _do] += _p["x1"][1] * _p["x2"][1]
NORM = {}
for _p in PATHS:
    _ao, _mo, _do = _p["out"]
    NORM[_ao] = float(1.0 / np.sqrt(_count[_ao])) if _count[_ao] > 1 else 1.0


# ---------------------------------------------------------------------------
# Effective weight: fold weight + Wigner 3j + normalization into
# W_eff[o, a, b] so the kernel is a plain bilinear contraction on the MXU.
# ---------------------------------------------------------------------------
def _build_w_eff(weight_flat):
    W = jnp.zeros((DIM_OUT, DIM_IN1, DIM_IN2), jnp.float32)
    for p in PATHS:
        a1, m1, d1 = p["x1"]
        a2, m2, d2 = p["x2"]
        ao, mo, do = p["out"]
        ws = p["w"]
        C = jnp.asarray(p["C"])                                   # (do, d1, d2)
        w = weight_flat[ws:ws + mo * m1 * m2].reshape(mo, m1, m2)
        blk = jnp.einsum("wuv,kij->wkuivj", w, C) * NORM[ao]
        blk = blk.reshape(mo * do, m1 * d1, m2 * d2)
        W = W.at[ao:ao + mo * do, a1:a1 + m1 * d1, a2:a2 + m2 * d2].add(blk)
    return W


# ---------------------------------------------------------------------------
# Pallas kernel.
#   x1_ref, x2_ref : (TB, 16)  batch-major f32 input tiles
#   wt_ref         : (256, 16) bf16 effective weight, rows=(a,b), cols=out
#   eye_ref        : (16, 16)  bf16 identity (constant, resident)
#   o_ref          : (TB, 16)  batch-major f32 output tile
# ---------------------------------------------------------------------------
LANE_CHUNK = 128   # batch lanes per inner step; keeps the 256 x LC outer
                   # product intermediate at <= ~32 vregs (no VMEM slab).


def _wtp_kernel(x1_ref, x2_ref, wt_ref, eye_ref, o_ref):
    tb = x1_ref.shape[0]
    lc = min(LANE_CHUNK, tb)

    wt = wt_ref[...]            # (256, 16) bf16 -- resident across the grid
    eye = eye_ref[...]          # (16, 16)  bf16 -- resident across the grid

    nt = (((1,), (1,)), ((), ()))   # contract last dims   (q @ k.T style)
    tn = (((0,), (0,)), ((), ()))   # contract first dims  (p.T @ do style)

    # Fully static (unrolled) inner loop over 128-lane batch chunks.
    for c in range(tb // lc):
        lo, hi = c * lc, (c + 1) * lc
        x1c = x1_ref[lo:hi, :].astype(jnp.bfloat16)      # (lc, 16)
        x2c = x2_ref[lo:hi, :].astype(jnp.bfloat16)      # (lc, 16)

        # Feature-major relayout via the constant identity on the MXU
        # (exact for bf16 values, drain is only 16 x lc) -- avoids both a
        # per-step eye rebuild and an unsupported-layout XLU transpose.
        x1f = lax.dot_general(eye, x1c, nt,
                              preferred_element_type=jnp.float32)   # (16, lc)
        x2f = lax.dot_general(eye, x2c, nt,
                              preferred_element_type=jnp.float32)   # (16, lc)

        # Outer product over the two feature axes (VPU, f32 so v5e's
        # f32-only VALUs are happy): op[a*16+b, z] = x1[z, a] * x2[z, b].
        op = (x1f.reshape(DIM_IN1, 1, lc) *
              x2f.reshape(1, DIM_IN2, lc)).reshape(DIM_IN1 * DIM_IN2, lc)

        # Single K=256 bf16 MXU matmul; contracting dim 0 of both operands
        # lands the result batch-major, so no output transpose is needed.
        oc = lax.dot_general(op.astype(jnp.bfloat16), wt, tn,
                             preferred_element_type=jnp.float32)    # (lc, 16)

        o_ref[lo:hi, :] = oc.astype(o_ref.dtype)


def _pick_tb(b, cap=4096):
    # Largest batch (lane) tile that amortizes the ~0.35us/step grid overhead
    # without padding whole arrays; keep an even number of grid steps when
    # there is more than one so the 'parallel' axis can shard across both
    # TensorCores on megacore parts (v7x).  tb never exceeds b, so every
    # block fits inside the array (only the last block is partial).
    if b <= 128:
        return b
    n = -(-b // cap)
    if n > 1 and n % 2:
        n += 1
    tb = -(-b // n)
    tb = min(((tb + 127) // 128) * 128, (b // 128) * 128)
    return max(tb, 128)


def _pallas_wtp(x1, x2, wt, eye, tb):
    b = x1.shape[0]
    grid = (pl.cdiv(b, tb),)        # non-divisible grid: no jnp.pad; the
                                    # partial last block's extra rows are
                                    # undefined on read and dropped on write.
    return pl.pallas_call(
        _wtp_kernel,
        out_shape=jax.ShapeDtypeStruct((b, DIM_OUT), jnp.float32),
        grid_spec=pltpu.PrefetchScalarGridSpec(
            num_scalar_prefetch=0,
            grid=grid,
            in_specs=[
                pl.BlockSpec((tb, DIM_IN1), lambda i: (i, 0)),
                pl.BlockSpec((tb, DIM_IN2), lambda i: (i, 0)),
                # shared effective weight + identity: constant index_map ->
                # fetched once, stay resident in VMEM across all grid steps
                pl.BlockSpec((DIM_IN1 * DIM_IN2, DIM_OUT), lambda i: (0, 0)),
                pl.BlockSpec((DIM_IN1, DIM_IN1), lambda i: (0, 0)),
            ],
            out_specs=pl.BlockSpec((tb, DIM_OUT), lambda i: (i, 0)),
        ),
        compiler_params=pltpu.CompilerParams(
            dimension_semantics=("parallel",),
        ),
    )(x1, x2, wt, eye)


# ---------------------------------------------------------------------------
# Wrapper: mirrors WeightedTensorProduct.forward.
# ---------------------------------------------------------------------------
def weighted_tensor_product(features_1, features_2, weight):
    size1 = features_1.shape[:-1]
    size2 = features_2.shape[:-1]
    assert features_1.shape[-1] == DIM_IN1
    assert features_2.shape[-1] == DIM_IN2
    assert size1 == size2

    x1f = features_1.reshape(-1, DIM_IN1).astype(jnp.float32)
    x2f = features_2.reshape(-1, DIM_IN2).astype(jnp.float32)
    b = x1f.shape[0]
    if b == 0:
        return jnp.zeros((*size1, DIM_OUT), jnp.float32)

    wf = jnp.asarray(weight, jnp.float32).reshape(-1, NWEIGHT)
    # TODO(synk): per-sample weights (wf.shape[0] == batch) cannot be folded
    # into a shared W_eff; only the module's shared-parameter path is handled.
    assert wf.shape[0] == 1, "only a shared weight vector is supported"
    w_eff = _build_w_eff(wf[0])                                   # (out, a, b)
    # rows = (a*16 + b), cols = out: feeds the contract-dim-0 K=256 matmul so
    # the kernel result is batch-major; ~8 KiB, resident in VMEM.
    wt = w_eff.transpose(1, 2, 0).reshape(DIM_IN1 * DIM_IN2, DIM_OUT)
    wt = wt.astype(jnp.bfloat16)
    eye = jnp.eye(DIM_IN1, dtype=jnp.bfloat16)

    tb = _pick_tb(b)
    out = _pallas_wtp(x1f, x2f, wt, eye, tb)                      # (b, 16)
    return out.reshape(*size1, DIM_OUT)


# ---------------------------------------------------------------------------
# Pure-JAX reference (direct transcription of the generated torch einsum code)
# ---------------------------------------------------------------------------
def reference(x1f, x2f, wf):
    b = x1f.shape[0]
    out = jnp.zeros((b, DIM_OUT), jnp.float32)
    for p in PATHS:
        a1, m1, d1 = p["x1"]
        a2, m2, d2 = p["x2"]
        ao, mo, do = p["out"]
        ws = p["w"]
        C = jnp.asarray(p["C"])
        s1 = x1f[:, a1:a1 + m1 * d1].reshape(b, m1, d1)
        s2 = x2f[:, a2:a2 + m2 * d2].reshape(b, m2, d2)
        sw = wf[:, ws:ws + mo * m1 * m2].reshape(b, mo, m1, m2)
        ss = jnp.einsum("zui,zvj->zuvij", s1, s2)
        contrib = jnp.einsum("zwuv,kij,zuvij->zwk", sw, C, ss).reshape(b, mo * do)
        out = out.at[:, ao:ao + mo * do].add(contrib)
    for ao, scale in NORM.items():
        mo, do = 4, (1 if ao == 0 else 3)
        out = out.at[:, ao:ao + mo * do].multiply(scale)
    return out


if __name__ == "__main__":
    key = jax.random.PRNGKey(0)
    k1, k2, kw = jax.random.split(key, 3)

    # deterministic stand-in for torch.nn.Parameter(torch.randn(nweight))
    weight = jax.random.normal(kw, (NWEIGHT,), jnp.float32)

    # Two small cases: B=128 (single tile, single chunk) and B=650
    # (non-divisible grid of 2 steps with a partial last block).
    for lead in [(2, 64), (5, 130)]:
        kk1, kk2 = jax.random.split(jax.random.fold_in(k1, lead[-1]))
        x1 = jax.random.normal(kk1, (*lead, DIM_IN1), jnp.float32)
        x2 = jax.random.normal(kk2, (*lead, DIM_IN2), jnp.float32)

        out = weighted_tensor_product(x1, x2, weight)
        out = jax.block_until_ready(out)
        assert out.shape == (*lead, DIM_OUT)

        b = int(np.prod(lead))
        x1r = x1.reshape(b, DIM_IN1)
        x2r = x2.reshape(b, DIM_IN2)
        wr = jnp.broadcast_to(weight[None, :], (b, NWEIGHT))
        ref = reference(x1r, x2r, wr).reshape(*lead, DIM_OUT)
        # tolerance sized for bf16 MXU operands (weight, outer product) with
        # f32 accumulation; outputs are O(1) so this is ~2% relative.
        np.testing.assert_allclose(np.asarray(out), np.asarray(ref),
                                   rtol=2e-2, atol=2e-2)

    print("KERNEL_OK")
</pallas_src>

<mosaic_0001>
module attributes {stable_mosaic.version = 11 : i64} {
  func.func @_wtp_kernel(%arg0: i32, %arg1: memref<128x16xf32, #tpu.memory_space<vmem>>, %arg2: memref<128x16xf32, #tpu.memory_space<vmem>>, %arg3: memref<256x16xbf16, #tpu.memory_space<vmem>>, %arg4: memref<16x16xbf16, #tpu.memory_space<vmem>>, %arg5: memref<128x16xf32, #tpu.memory_space<vmem>>) attributes {dimension_semantics = [#tpu.dimension_semantics<parallel>], iteration_bounds = array<i64: 1>, scalar_prefetch = 0 : i64, scratch_operands = 0 : i64, tpu.core_type = #tpu.core_type<tc>, window_params = [{transform_indices = @transform_0, window_bounds = array<i64: 128, 16>}, {transform_indices = @transform_1, window_bounds = array<i64: 128, 16>}, {pipeline_mode = #tpu.pipeline_mode<synchronous>, transform_indices = @transform_2, window_bounds = array<i64: 256, 16>}, {pipeline_mode = #tpu.pipeline_mode<synchronous>, transform_indices = @transform_3, window_bounds = array<i64: 16, 16>}, {transform_indices = @transform_4, window_bounds = array<i64: 128, 16>}]} {
    %c0 = arith.constant 0 : index
    %c0_0 = arith.constant 0 : index
    %0 = vector.load %arg3[%c0, %c0_0] : memref<256x16xbf16, #tpu.memory_space<vmem>>, vector<256x16xbf16>
    %c0_1 = arith.constant 0 : index
    %c0_2 = arith.constant 0 : index
    %1 = vector.load %arg4[%c0_1, %c0_2] : memref<16x16xbf16, #tpu.memory_space<vmem>>, vector<16x16xbf16>
    %c0_3 = arith.constant 0 : index
    %c0_4 = arith.constant 0 : index
    %2 = vector.load %arg1[%c0_3, %c0_4] : memref<128x16xf32, #tpu.memory_space<vmem>>, vector<128x16xf32>
    %3 = arith.truncf %2 : vector<128x16xf32> to vector<128x16xbf16>
    %c0_5 = arith.constant 0 : index
    %c0_6 = arith.constant 0 : index
    %4 = vector.load %arg2[%c0_5, %c0_6] : memref<128x16xf32, #tpu.memory_space<vmem>>, vector<128x16xf32>
    %5 = arith.truncf %4 : vector<128x16xf32> to vector<128x16xbf16>
    %cst = arith.constant dense<0.000000e+00> : vector<16x128xf32>
    %6 = tpu.matmul %1, %3, %cst {dimension_numbers = #tpu.dot_dimension_numbers<[1], [1], [0], [0], [0, 0, 1, 0], [], []>} : vector<16x16xbf16>, vector<128x16xbf16>, vector<16x128xf32> -> vector<16x128xf32>
    %cst_7 = arith.constant dense<0.000000e+00> : vector<16x128xf32>
    %7 = tpu.matmul %1, %5, %cst_7 {dimension_numbers = #tpu.dot_dimension_numbers<[1], [1], [0], [0], [0, 0, 1, 0], [], []>} : vector<16x16xbf16>, vector<128x16xbf16>, vector<16x128xf32> -> vector<16x128xf32>
    %8 = vector.shape_cast %6 : vector<16x128xf32> to vector<16x1x128xf32>
    %9 = vector.shape_cast %7 : vector<16x128xf32> to vector<1x16x128xf32>
    %10 = vector.broadcast %8 : vector<16x1x128xf32> to vector<16x16x128xf32>
    %11 = vector.broadcast %9 : vector<1x16x128xf32> to vector<16x16x128xf32>
    %12 = arith.mulf %10, %11 : vector<16x16x128xf32>
    %13 = vector.shape_cast %12 : vector<16x16x128xf32> to vector<256x128xf32>
    %14 = arith.truncf %13 : vector<256x128xf32> to vector<256x128xbf16>
    %cst_8 = arith.constant dense<0.000000e+00> : vector<128x16xf32>
    %15 = tpu.matmul %14, %0, %cst_8 {dimension_numbers = #tpu.dot_dimension_numbers<[0], [0], [1], [1], [0, 1, 1, 1], [], []>} : vector<256x128xbf16>, vector<256x16xbf16>, vector<128x16xf32> -> vector<128x16xf32>
    %c0_9 = arith.constant 0 : index
    %c0_10 = arith.constant 0 : index
    %16 = vector.load %arg5[%c0_9, %c0_10] : memref<128x16xf32, #tpu.memory_space<vmem>>, vector<128x16xf32>
    tpu.vector_store %arg5[%c0_9, %c0_10], %15 {strides = array<i32>} : memref<128x16xf32, #tpu.memory_space<vmem>>, vector<128x16xf32>,
    return
  }
  func.func @transform_0(%arg0: i32) -> (i32, i32) {
    %c0_i32 = arith.constant 0 : i32
    %c0_i32_0 = arith.constant 0 : i32
    return %arg0, %c0_i32 : i32, i32
  }
  func.func @transform_1(%arg0: i32) -> (i32, i32) {
    %c0_i32 = arith.constant 0 : i32
    %c0_i32_0 = arith.constant 0 : i32
    return %arg0, %c0_i32 : i32, i32
  }
  func.func @transform_2(%arg0: i32) -> (i32, i32) {
    %c0_i32 = arith.constant 0 : i32
    %c0_i32_0 = arith.constant 0 : i32
    %c0_i32_1 = arith.constant 0 : i32
    return %c0_i32, %c0_i32_0 : i32, i32
  }
  func.func @transform_3(%arg0: i32) -> (i32, i32) {
    %c0_i32 = arith.constant 0 : i32
    %c0_i32_0 = arith.constant 0 : i32
    %c0_i32_1 = arith.constant 0 : i32
    return %c0_i32, %c0_i32_0 : i32, i32
  }
  func.func @transform_4(%arg0: i32) -> (i32, i32) {
    %c0_i32 = arith.constant 0 : i32
    %c0_i32_0 = arith.constant 0 : i32
    return %arg0, %c0_i32 : i32, i32
  }
}

</mosaic_0001>

<llo_original>
// kernel: tpu_custom_call.1
$region0: #{tpu_custom_call.1}
  #allocation0 [shape = 'u32[]', space=smem, size = 0x4, offset = 0x4, fixed_abs, tag = 'smem constant byte address 0x4 - core index']
  #allocation1 [shape = 'u32[144,128]{1,0:T(1,128)}', space=vmem, size = 0x12000, scoped, tag = 'internal scratch']
  %s0 = inlined_call_operand.vmem [shape: f32[128,16], index: 0, kind: input, shape index: {}]
  %s1 = inlined_call_operand.vmem [shape: f32[128,16], index: 1, kind: input, shape index: {}]
  %s2 = inlined_call_operand.vmem [shape: bf16[256,16], index: 2, kind: input, shape index: {}]
  %s3 = inlined_call_operand.vmem [shape: bf16[16,16], index: 3, kind: input, shape index: {}]
  %s4 = inlined_call_operand.vmem [shape: f32[128,16], index: 4, kind: output, shape index: {}]
  %s5 = sld [smem:[#allocation0]]
  $region26: #{tpu_custom_call.1} parent=0
    _
  %s7 = ssub.s32 1, %s5
  %s8 = scalar_select 0, %s7, %s5
  // Predicated region
  $region2: #{tpu_custom_call.1} parent=0 // pred_check
    _
  $region3: #{tpu_custom_call.1} parent=0 // pred_check_branch
    %10 = sbr.rel (0) target = $region5
  $region4: #{tpu_custom_call.1} parent=0 // pred_region
    _
  $region5: #{tpu_custom_call.1} parent=0 // pred_fallthru
    _
  // Predicated region
  $region6: #{tpu_custom_call.1} parent=0 // pred_check
    _
  $region7: #{tpu_custom_call.1} parent=0 // pred_check_branch
    %12 = sbr.rel (0) target = $region9
  $region8: #{tpu_custom_call.1} parent=0 // pred_region
    _
  $region9: #{tpu_custom_call.1} parent=0 // pred_fallthru
    _
  // Predicated region
  $region10: #{tpu_custom_call.1} parent=0 // pred_check
    _
  $region11: #{tpu_custom_call.1} parent=0 // pred_check_branch
    %14 = sbr.rel (0) target = $region13
  $region12: #{tpu_custom_call.1} parent=0 // pred_region
    _
  $region13: #{tpu_custom_call.1} parent=0 // pred_fallthru
    _
  // Predicated region
  $region14: #{tpu_custom_call.1} parent=0 // pred_check
    _
  $region15: #{tpu_custom_call.1} parent=0 // pred_check_branch
    %16 = sbr.rel (0) target = $region17
  $region16: #{tpu_custom_call.1} parent=0 // pred_region
    _
  $region17: #{tpu_custom_call.1} parent=0 // pred_fallthru
    _
  %v18 = vld [vmem:[%s2] sm:$0xf]
  %v19 = vld [vmem:[%s2 + $0x4] sm:$0xf]
  %v20 = vld [vmem:[%s2 + $0x8] sm:$0xf]
  %v21 = vld [vmem:[%s2 + $0xc] sm:$0xf]
  %v22 = vld [vmem:[%s2 + $0x10] sm:$0xf]
  %v23 = vld [vmem:[%s2 + $0x14] sm:$0xf]
  %v24 = vld [vmem:[%s2 + $0x18] sm:$0xf]
  %v25 = vld [vmem:[%s2 + $0x1c] sm:$0xf]
  %v26 = vld [vmem:[%s2 + $0x20] sm:$0xf]
  %v27 = vld [vmem:[%s2 + $0x24] sm:$0xf]
  %v28 = vld [vmem:[%s2 + $0x28] sm:$0xf]
  %v29 = vld [vmem:[%s2 + $0x2c] sm:$0xf]
  %v30 = vld [vmem:[%s2 + $0x30] sm:$0xf]
  %v31 = vld [vmem:[%s2 + $0x34] sm:$0xf]
  %v32 = vld [vmem:[%s2 + $0x38] sm:$0xf]
  %v33 = vld [vmem:[%s2 + $0x3c] sm:$0xf]
  %v34 = vld [vmem:[%s2 + $0x40] sm:$0xf]
  %v35 = vld [vmem:[%s2 + $0x44] sm:$0xf]
  %v36 = vld [vmem:[%s2 + $0x48] sm:$0xf]
  %v37 = vld [vmem:[%s2 + $0x4c] sm:$0xf]
  %v38 = vld [vmem:[%s2 + $0x50] sm:$0xf]
  %v39 = vld [vmem:[%s2 + $0x54] sm:$0xf]
  %v40 = vld [vmem:[%s2 + $0x58] sm:$0xf]
  %v41 = vld [vmem:[%s2 + $0x5c] sm:$0xf]
  %v42 = vld [vmem:[%s2 + $0x60] sm:$0xf]
  %v43 = vld [vmem:[%s2 + $0x64] sm:$0xf]
  %v44 = vld [vmem:[%s2 + $0x68] sm:$0xf]
  %v45 = vld [vmem:[%s2 + $0x6c] sm:$0xf]
  %v46 = vld [vmem:[%s2 + $0x70] sm:$0xf]
  %v47 = vld [vmem:[%s2 + $0x74] sm:$0xf]
  %v48 = vld [vmem:[%s2 + $0x78] sm:$0xf]
  %v49 = vld [vmem:[%s2 + $0x7c] sm:$0xf]
  %v50 = vld [vmem:[%s3] sm:$0xf]
  %v51 = vld [vmem:[%s3 + $0x4] sm:$0xf]
  %v52 = vld [vmem:[%s0] sm:$0xff]
  %v53 = vld [vmem:[%s0 + $0x8] sm:$0xff]
  %v54 = vld [vmem:[%s0 + $0x10] sm:$0xff]
  %v55 = vld [vmem:[%s0 + $0x18] sm:$0xff]
  %v56 = vld [vmem:[%s0 + $0x20] sm:$0xff]
  %v57 = vld [vmem:[%s0 + $0x28] sm:$0xff]
  %v58 = vld [vmem:[%s0 + $0x30] sm:$0xff]
  %v59 = vld [vmem:[%s0 + $0x38] sm:$0xff]
  %v60 = vld [vmem:[%s0 + $0x40] sm:$0xff]
  %v61 = vld [vmem:[%s0 + $0x48] sm:$0xff]
  %v62 = vld [vmem:[%s0 + $0x50] sm:$0xff]
  %v63 = vld [vmem:[%s0 + $0x58] sm:$0xff]
  %v64 = vld [vmem:[%s0 + $0x60] sm:$0xff]
  %v65 = vld [vmem:[%s0 + $0x68] sm:$0xff]
  %v66 = vld [vmem:[%s0 + $0x70] sm:$0xff]
  %v67 = vld [vmem:[%s0 + $0x78] sm:$0xff]
  %v68 = vpack.c.bf16 %v53, %v52
  %v69 = vpack.c.bf16 %v55, %v54
  %v70 = vpack.c.bf16 %v57, %v56
  %v71 = vpack.c.bf16 %v59, %v58
  %v72 = vpack.c.bf16 %v61, %v60
  %v73 = vpack.c.bf16 %v63, %v62
  %v74 = vpack.c.bf16 %v65, %v64
  %v75 = vpack.c.bf16 %v67, %v66
  %v76 = vld [vmem:[%s1] sm:$0xff]
  %v77 = vld [vmem:[%s1 + $0x8] sm:$0xff]
  %v78 = vld [vmem:[%s1 + $0x10] sm:$0xff]
  %v79 = vld [vmem:[%s1 + $0x18] sm:$0xff]
  %v80 = vld [vmem:[%s1 + $0x20] sm:$0xff]
  %v81 = vld [vmem:[%s1 + $0x28] sm:$0xff]
  %v82 = vld [vmem:[%s1 + $0x30] sm:$0xff]
  %v83 = vld [vmem:[%s1 + $0x38] sm:$0xff]
  %v84 = vld [vmem:[%s1 + $0x40] sm:$0xff]
  %v85 = vld [vmem:[%s1 + $0x48] sm:$0xff]
  %v86 = vld [vmem:[%s1 + $0x50] sm:$0xff]
  %v87 = vld [vmem:[%s1 + $0x58] sm:$0xff]
  %v88 = vld [vmem:[%s1 + $0x60] sm:$0xff]
  %v89 = vld [vmem:[%s1 + $0x68] sm:$0xff]
  %v90 = vld [vmem:[%s1 + $0x70] sm:$0xff]
  %v91 = vld [vmem:[%s1 + $0x78] sm:$0xff]
  %v92 = vpack.c.bf16 %v77, %v76
  %v93 = vpack.c.bf16 %v79, %v78
  %v94 = vpack.c.bf16 %v81, %v80
  %v95 = vpack.c.bf16 %v83, %v82
  %v96 = vpack.c.bf16 %v85, %v84
  %v97 = vpack.c.bf16 %v87, %v86
  %v98 = vpack.c.bf16 %v89, %v88
  %v99 = vpack.c.bf16 %v91, %v90
  %v102 = vunpack.c.l.b16 %v50
  %v103 = vunpack.c.l.b16 %v51
  %v104 = vpack.c.b16 %v103, %v102
  %vm105 = vcmask 130048
  %v107 = vsel %vm105, %v104, 0
  %v110 = vsel %vm105, %v68, 0
  %v113 = vsel %vm105, %v69, 0
  %v116 = vsel %vm105, %v70, 0
  %v119 = vsel %vm105, %v71, 0
  %v122 = vsel %vm105, %v72, 0
  %v125 = vsel %vm105, %v73, 0
  %v128 = vsel %vm105, %v74, 0
  %v131 = vsel %vm105, %v75, 0
  %133 = vmatprep.subr.bf16.mxu0 0
  %134 = vmatpush1.bf16.xpose.msra.mxu0 %v110
  %135 = vmatprep.subr.bf16.mxu0 0
  %136 = vmatpush1.bf16.xpose.msra.mxu0 %v113
  %137 = vmatprep.subr.bf16.mxu0 0
  %138 = vmatpush1.bf16.xpose.msra.mxu0 %v116
  %139 = vmatprep.subr.bf16.mxu0 0
  %140 = vmatpush1.bf16.xpose.msra.mxu0 %v119
  %141 = vmatprep.subr.bf16.mxu0 0
  %142 = vmatpush1.bf16.xpose.msra.mxu0 %v122
  %143 = vmatprep.subr.bf16.mxu0 0
  %144 = vmatpush1.bf16.xpose.msra.mxu0 %v125
  %145 = vmatprep.subr.bf16.mxu0 0
  %146 = vmatpush1.bf16.xpose.msra.mxu0 %v128
  %147 = vmatprep.subr.bf16.mxu0 0
  %148 = vmatpush1.bf16.xpose.msra.mxu0 %v131
  %149 = vmatprep.subr.bf16.mxu0 0
  %150 = vmatpush1.bf16.xpose.msra.mxu0 0
  %151 = vmatprep.subr.bf16.mxu0 0
  %152 = vmatpush1.bf16.xpose.msra.mxu0 0
  %153 = vmatprep.subr.bf16.mxu0 0
  %154 = vmatpush1.bf16.xpose.msra.mxu0 0
  %155 = vmatprep.subr.bf16.mxu0 0
  %156 = vmatpush1.bf16.xpose.msra.mxu0 0
  %157 = vmatprep.subr.bf16.mxu0 0
  %158 = vmatpush1.bf16.xpose.msra.mxu0 0
  %159 = vmatprep.subr.bf16.mxu0 0
  %160 = vmatpush1.bf16.xpose.msra.mxu0 0
  %161 = vmatprep.subr.bf16.mxu0 0
  %162 = vmatpush1.bf16.xpose.msra.mxu0 0
  %163 = vmatprep.subr.bf16.mxu0 0
  %164 = vmatpush1.bf16.xpose.msra.mxu0 0
  %165 = vmatprep.mubr.bf16.mxu0 0
  %166 = vmatmul.mubr.bf16.gmra.mrb[0].mxu0 %v107
  %v167 = vpop.f32.mrb[0].mxu0
  %v168 = vadd.f32 0.0, %v167
  %v169 = vpop.f32.mrb[0].mxu0
  %v170 = vpop.f32.mrb[0].mxu0
  %v171 = vadd.f32 0.0, %v170
  %v172 = vpop.f32.mrb[0].mxu0
  %173 = vdwg.mxu0
  %v175 = vsel %vm105, %v92, 0
  %v178 = vsel %vm105, %v93, 0
  %v181 = vsel %vm105, %v94, 0
  %v184 = vsel %vm105, %v95, 0
  %v187 = vsel %vm105, %v96, 0
  %v190 = vsel %vm105, %v97, 0
  %v193 = vsel %vm105, %v98, 0
  %v196 = vsel %vm105, %v99, 0
  %198 = vmatprep.subr.bf16.mxu0 0
  %199 = vmatpush1.bf16.xpose.msra.mxu0 %v175
  %200 = vmatprep.subr.bf16.mxu0 0
  %201 = vmatpush1.bf16.xpose.msra.mxu0 %v178
  %202 = vmatprep.subr.bf16.mxu0 0
  %203 = vmatpush1.bf16.xpose.msra.mxu0 %v181
  %204 = vmatprep.subr.bf16.mxu0 0
  %205 = vmatpush1.bf16.xpose.msra.mxu0 %v184
  %206 = vmatprep.subr.bf16.mxu0 0
  %207 = vmatpush1.bf16.xpose.msra.mxu0 %v187
  %208 = vmatprep.subr.bf16.mxu0 0
  %209 = vmatpush1.bf16.xpose.msra.mxu0 %v190
  %210 = vmatprep.subr.bf16.mxu0 0
  %211 = vmatpush1.bf16.xpose.msra.mxu0 %v193
  %212 = vmatprep.subr.bf16.mxu0 0
  %213 = vmatpush1.bf16.xpose.msra.mxu0 %v196
  %214 = vmatprep.subr.bf16.mxu0 0
  %215 = vmatpush1.bf16.xpose.msra.mxu0 0
  %216 = vmatprep.subr.bf16.mxu0 0
  %217 = vmatpush1.bf16.xpose.msra.mxu0 0
  %218 = vmatprep.subr.bf16.mxu0 0
  %219 = vmatpush1.bf16.xpose.msra.mxu0 0
  %220 = vmatprep.subr.bf16.mxu0 0
  %221 = vmatpush1.bf16.xpose.msra.mxu0 0
  %222 = vmatprep.subr.bf16.mxu0 0
  %223 = vmatpush1.bf16.xpose.msra.mxu0 0
  %224 = vmatprep.subr.bf16.mxu0 0
  %225 = vmatpush1.bf16.xpose.msra.mxu0 0
  %226 = vmatprep.subr.bf16.mxu0 0
  %227 = vmatpush1.bf16.xpose.msra.mxu0 0
  %228 = vmatprep.subr.bf16.mxu0 0
  %229 = vmatpush1.bf16.xpose.msra.mxu0 0
  %230 = vmatprep.mubr.bf16.mxu0 0
  %231 = vmatmul.mubr.bf16.gmra.mrb[0].mxu0 %v107
  %v232 = vpop.f32.mrb[0].mxu0
  %v233 = vadd.f32 0.0, %v232
  %v234 = vpop.f32.mrb[0].mxu0
  %v235 = vpop.f32.mrb[0].mxu0
  %v236 = vadd.f32 0.0, %v235
  %v237 = vpop.f32.mrb[0].mxu0
  %238 = vdwg.mxu0
  %v241 = vcombine.high %v168, %v168
  %v243 = vunpack.c.l.s4 1966171168
  %v244 = vunpack.c.0.s8 %v243
  %v245 = vlaneseq
  %v246 = vshrl.u32 %v245, 7
  %v247 = vsub.s32 %v244, %v246
  %v248 = vrot.slane %v168, %v247
  %v250 = vunpack.c.l.s4 1966171168
  %v251 = vunpack.c.0.s8 %v250
  %v252 = vlaneseq
  %v253 = vshrl.u32 %v252, 7
  %v254 = vsub.s32 %v251, %v253
  %v255 = vrot.slane %v241, %v254
  %v256 = vcombine.high %v248, %v248
  %v257 = vcombine.high %v255, %v255
  %v259 = vunpack.c.l.s4 1966171168
  %v260 = vunpack.c.0.s8 %v259
  %v261 = vlaneseq
  %v262 = vshrl.u32 %v261, 7
  %v263 = vsub.s32 %v260, %v262
  %v264 = vrot.slane %v248, %v263
  %v266 = vunpack.c.l.s4 1966171168
  %v267 = vunpack.c.0.s8 %v266
  %v268 = vlaneseq
  %v269 = vshrl.u32 %v268, 7
  %v270 = vsub.s32 %v267, %v269
  %v271 = vrot.slane %v255, %v270
  %v273 = vunpack.c.l.s4 1966171168
  %v274 = vunpack.c.0.s8 %v273
  %v275 = vlaneseq
  %v276 = vshrl.u32 %v275, 7
  %v277 = vsub.s32 %v274, %v276
  %v278 = vrot.slane %v256, %v277
  %v280 = vunpack.c.l.s4 1966171168
  %v281 = vunpack.c.0.s8 %v280
  %v282 = vlaneseq
  %v283 = vshrl.u32 %v282, 7
  %v284 = vsub.s32 %v281, %v283
  %v285 = vrot.slane %v257, %v284
  %v286 = vcombine.high %v264, %v264
  %v287 = vcombine.high %v271, %v271
  %v288 = vcombine.high %v278, %v278
  %v289 = vcombine.high %v285, %v285
  %v290 = vcombine.high %v171, %v171
  %v292 = vunpack.c.l.s4 1966171168
  %v293 = vunpack.c.0.s8 %v292
  %v294 = vlaneseq
  %v295 = vshrl.u32 %v294, 7
  %v296 = vsub.s32 %v293, %v295
  %v297 = vrot.slane %v171, %v296
  %v299 = vunpack.c.l.s4 1966171168
  %v300 = vunpack.c.0.s8 %v299
  %v301 = vlaneseq
  %v302 = vshrl.u32 %v301, 7
  %v303 = vsub.s32 %v300, %v302
  %v304 = vrot.slane %v290, %v303
  %v305 = vcombine.high %v297, %v297
  %v306 = vcombine.high %v304, %v304
  %v308 = vunpack.c.l.s4 1966171168
  %v309 = vunpack.c.0.s8 %v308
  %v310 = vlaneseq
  %v311 = vshrl.u32 %v310, 7
  %v312 = vsub.s32 %v309, %v311
  %v313 = vrot.slane %v297, %v312
  %v315 = vunpack.c.l.s4 1966171168
  %v316 = vunpack.c.0.s8 %v315
  %v317 = vlaneseq
  %v318 = vshrl.u32 %v317, 7
  %v319 = vsub.s32 %v316, %v318
  %v320 = vrot.slane %v304, %v319
  %v322 = vunpack.c.l.s4 1966171168
  %v323 = vunpack.c.0.s8 %v322
  %v324 = vlaneseq
  %v325 = vshrl.u32 %v324, 7
  %v326 = vsub.s32 %v323, %v325
  %v327 = vrot.slane %v305, %v326
  %v329 = vunpack.c.l.s4 1966171168
  %v330 = vunpack.c.0.s8 %v329
  %v331 = vlaneseq
  %v332 = vshrl.u32 %v331, 7
  %v333 = vsub.s32 %v330, %v332
  %v334 = vrot.slane %v306, %v333
  %v335 = vcombine.high %v313, %v313
  %v336 = vcombine.high %v320, %v320
  %v337 = vcombine.high %v327, %v327
  %v338 = vcombine.high %v334, %v334
  %v339 = vlaneseq
  %v340 = vshrl.u32 %v339, 7
  %v341 = vsub.s32 0, %v340
  %v342 = vrot.slane %v264, %v341
  %v343 = vlaneseq
  %v344 = vshrl.u32 %v343, 7
  %v345 = vsub.s32 0, %v344
  %v346 = vrot.slane %v278, %v345
  %v347 = vlaneseq
  %v348 = vshrl.u32 %v347, 7
  %v349 = vsub.s32 0, %v348
  %v350 = vrot.slane %v286, %v349
  %v351 = vlaneseq
  %v352 = vshrl.u32 %v351, 7
  %v353 = vsub.s32 0, %v352
  %v354 = vrot.slane %v288, %v353
  %v355 = vlaneseq
  %v356 = vshrl.u32 %v355, 7
  %v357 = vsub.s32 0, %v356
  %v358 = vrot.slane %v271, %v357
  %v359 = vlaneseq
  %v360 = vshrl.u32 %v359, 7
  %v361 = vsub.s32 0, %v360
  %v362 = vrot.slane %v285, %v361
  %v363 = vlaneseq
  %v364 = vshrl.u32 %v363, 7
  %v365 = vsub.s32 0, %v364
  %v366 = vrot.slane %v287, %v365
  %v367 = vlaneseq
  %v368 = vshrl.u32 %v367, 7
  %v369 = vsub.s32 0, %v368
  %v370 = vrot.slane %v289, %v369
  %v371 = vlaneseq
  %v372 = vshrl.u32 %v371, 7
  %v373 = vsub.s32 0, %v372
  %v374 = vrot.slane %v313, %v373
  %v375 = vlaneseq
  %v376 = vshrl.u32 %v375, 7
  %v377 = vsub.s32 0, %v376
  %v378 = vrot.slane %v327, %v377
  %v379 = vlaneseq
  %v380 = vshrl.u32 %v379, 7
  %v381 = vsub.s32 0, %v380
  %v382 = vrot.slane %v335, %v381
  %v383 = vlaneseq
  %v384 = vshrl.u32 %v383, 7
  %v385 = vsub.s32 0, %v384
  %v386 = vrot.slane %v337, %v385
  %v387 = vlaneseq
  %v388 = vshrl.u32 %v387, 7
  %v389 = vsub.s32 0, %v388
  %v390 = vrot.slane %v320, %v389
  %v391 = vlaneseq
  %v392 = vshrl.u32 %v391, 7
  %v393 = vsub.s32 0, %v392
  %v394 = vrot.slane %v334, %v393
  %v395 = vlaneseq
  %v396 = vshrl.u32 %v395, 7
  %v397 = vsub.s32 0, %v396
  %v398 = vrot.slane %v336, %v397
  %v399 = vlaneseq
  %v400 = vshrl.u32 %v399, 7
  %v401 = vsub.s32 0, %v400
  %v402 = vrot.slane %v338, %v401
  %v419 = vmul.f32 %v342, %v233
  %v420 = vmul.f32 %v342, %v236
  %v421 = vmul.f32 %v346, %v233
  %v422 = vmul.f32 %v346, %v236
  %v423 = vmul.f32 %v350, %v233
  %v424 = vmul.f32 %v350, %v236
  %v425 = vmul.f32 %v354, %v233
  %v426 = vmul.f32 %v354, %v236
  %v427 = vmul.f32 %v358, %v233
  %v428 = vmul.f32 %v358, %v236
  %v429 = vmul.f32 %v362, %v233
  %v430 = vmul.f32 %v362, %v236
  %v431 = vmul.f32 %v366, %v233
  %v432 = vmul.f32 %v366, %v236
  %v433 = vmul.f32 %v370, %v233
  %v434 = vmul.f32 %v370, %v236
  %v435 = vmul.f32 %v374, %v233
  %v436 = vmul.f32 %v374, %v236
  %v437 = vmul.f32 %v378, %v233
  %v438 = vmul.f32 %v378, %v236
  %v439 = vmul.f32 %v382, %v233
  %v440 = vmul.f32 %v382, %v236
  %v441 = vmul.f32 %v386, %v233
  %v442 = vmul.f32 %v386, %v236
  %v443 = vmul.f32 %v390, %v233
  %v444 = vmul.f32 %v390, %v236
  %v445 = vmul.f32 %v394, %v233
  %v446 = vmul.f32 %v394, %v236
  %v447 = vmul.f32 %v398, %v233
  %v448 = vmul.f32 %v398, %v236
  %v449 = vmul.f32 %v402, %v233
  %v450 = vmul.f32 %v402, %v236
  %v451 = vpack.c.bf16 %v420, %v419
  %v452 = vpack.c.bf16 %v422, %v421
  %v453 = vpack.c.bf16 %v424, %v423
  %v454 = vpack.c.bf16 %v426, %v425
  %v455 = vpack.c.bf16 %v428, %v427
  %v456 = vpack.c.bf16 %v430, %v429
  %v457 = vpack.c.bf16 %v432, %v431
  %v458 = vpack.c.bf16 %v434, %v433
  %v459 = vpack.c.bf16 %v436, %v435
  %v460 = vpack.c.bf16 %v438, %v437
  %v461 = vpack.c.bf16 %v440, %v439
  %v462 = vpack.c.bf16 %v442, %v441
  %v463 = vpack.c.bf16 %v444, %v443
  %v464 = vpack.c.bf16 %v446, %v445
  %v465 = vpack.c.bf16 %v448, %v447
  %v466 = vpack.c.bf16 %v450, %v449
  %467 = vxpose.xlu0.c.b16.start [1/8] %v451, 128
  %468 = vxpose.xlu0.c.b16.cont [2/8] %v452, 128
  %469 = vxpose.xlu0.c.b16.cont [3/8] %v453, 128
  %470 = vxpose.xlu0.c.b16.cont [4/8] %v454, 128
  %471 = vxpose.xlu0.c.b16.cont [5/8] %v455, 128
  %472 = vxpose.xlu0.c.b16.cont [6/8] %v456, 128
  %473 = vxpose.xlu0.c.b16.cont [7/8] %v457, 128
  %474 = vxpose.xlu0.c.b16.end [8/8] %v458, 128
  %v475 = vpop.trf.xlu0
  %v476 = vpop.trf.xlu0
  %v477 = vpop.trf.xlu0
  %v478 = vpop.trf.xlu0
  %v479 = vpop.trf.xlu0
  %v480 = vpop.trf.xlu0
  %v481 = vpop.trf.xlu0
  %v482 = vpop.trf.xlu0
  %483 = vxpose.xlu0.c.b16.start [1/8] %v459, 128
  %484 = vxpose.xlu0.c.b16.cont [2/8] %v460, 128
  %485 = vxpose.xlu0.c.b16.cont [3/8] %v461, 128
  %486 = vxpose.xlu0.c.b16.cont [4/8] %v462, 128
  %487 = vxpose.xlu0.c.b16.cont [5/8] %v463, 128
  %488 = vxpose.xlu0.c.b16.cont [6/8] %v464, 128
  %489 = vxpose.xlu0.c.b16.cont [7/8] %v465, 128
  %490 = vxpose.xlu0.c.b16.end [8/8] %v466, 128
  %v491 = vpop.trf.xlu0
  %v492 = vpop.trf.xlu0
  %v493 = vpop.trf.xlu0
  %v494 = vpop.trf.xlu0
  %v495 = vpop.trf.xlu0
  %v496 = vpop.trf.xlu0
  %v497 = vpop.trf.xlu0
  %v498 = vpop.trf.xlu0
  %v531 = vunpack.c.l.b16 %v18
  %v532 = vunpack.c.l.b16 %v19
  %v533 = vunpack.c.l.b16 %v20
  %v534 = vunpack.c.l.b16 %v21
  %v535 = vunpack.c.l.b16 %v22
  %v536 = vunpack.c.l.b16 %v23
  %v537 = vunpack.c.l.b16 %v24
  %v538 = vunpack.c.l.b16 %v25
  %v539 = vunpack.c.l.b16 %v26
  %v540 = vunpack.c.l.b16 %v27
  %v541 = vunpack.c.l.b16 %v28
  %v542 = vunpack.c.l.b16 %v29
  %v543 = vunpack.c.l.b16 %v30
  %v544 = vunpack.c.l.b16 %v31
  %v545 = vunpack.c.l.b16 %v32
  %v546 = vunpack.c.l.b16 %v33
  %v547 = vunpack.c.l.b16 %v34
  %v548 = vunpack.c.l.b16 %v35
  %v549 = vunpack.c.l.b16 %v36
  %v550 = vunpack.c.l.b16 %v37
  %v551 = vunpack.c.l.b16 %v38
  %v552 = vunpack.c.l.b16 %v39
  %v553 = vunpack.c.l.b16 %v40
  %v554 = vunpack.c.l.b16 %v41
  %v555 = vunpack.c.l.b16 %v42
  %v556 = vunpack.c.l.b16 %v43
  %v557 = vunpack.c.l.b16 %v44
  %v558 = vunpack.c.l.b16 %v45
  %v559 = vunpack.c.l.b16 %v46
  %v560 = vunpack.c.l.b16 %v47
  %v561 = vunpack.c.l.b16 %v48
  %v562 = vunpack.c.l.b16 %v49
  %v563 = vpack.c.b16 %v532, %v531
  %v564 = vpack.c.b16 %v534, %v533
  %v565 = vpack.c.b16 %v536, %v535
  %v566 = vpack.c.b16 %v538, %v537
  %v567 = vpack.c.b16 %v540, %v539
  %v568 = vpack.c.b16 %v542, %v541
  %v569 = vpack.c.b16 %v544, %v543
  %v570 = vpack.c.b16 %v546, %v545
  %v571 = vpack.c.b16 %v548, %v547
  %v572 = vpack.c.b16 %v550, %v549
  %v573 = vpack.c.b16 %v552, %v551
  %v574 = vpack.c.b16 %v554, %v553
  %v575 = vpack.c.b16 %v556, %v555
  %v576 = vpack.c.b16 %v558, %v557
  %v577 = vpack.c.b16 %v560, %v559
  %v578 = vpack.c.b16 %v562, %v561
  %595 = vmatprep.subr.bf16.mxu0 0
  %596 = vmatpush1.bf16.msra.mxu0 %v563
  %597 = vmatprep.subr.bf16.mxu0 0
  %598 = vmatpush1.bf16.msra.mxu0 %v564
  %599 = vmatprep.subr.bf16.mxu0 0
  %600 = vmatpush1.bf16.msra.mxu0 %v565
  %601 = vmatprep.subr.bf16.mxu0 0
  %602 = vmatpush1.bf16.msra.mxu0 %v566
  %603 = vmatprep.subr.bf16.mxu0 0
  %604 = vmatpush1.bf16.msra.mxu0 %v567
  %605 = vmatprep.subr.bf16.mxu0 0
  %606 = vmatpush1.bf16.msra.mxu0 %v568
  %607 = vmatprep.subr.bf16.mxu0 0
  %608 = vmatpush1.bf16.msra.mxu0 %v569
  %609 = vmatprep.subr.bf16.mxu0 0
  %610 = vmatpush1.bf16.msra.mxu0 %v570
  %611 = vmatprep.subr.bf16.mxu0 0
  %612 = vmatpush1.bf16.msra.mxu0 %v571
  %613 = vmatprep.subr.bf16.mxu0 0
  %614 = vmatpush1.bf16.msra.mxu0 %v572
  %615 = vmatprep.subr.bf16.mxu0 0
  %616 = vmatpush1.bf16.msra.mxu0 %v573
  %617 = vmatprep.subr.bf16.mxu0 0
  %618 = vmatpush1.bf16.msra.mxu0 %v574
  %619 = vmatprep.subr.bf16.mxu0 0
  %620 = vmatpush1.bf16.msra.mxu0 %v575
  %621 = vmatprep.subr.bf16.mxu0 0
  %622 = vmatpush1.bf16.msra.mxu0 %v576
  %623 = vmatprep.subr.bf16.mxu0 0
  %624 = vmatpush1.bf16.msra.mxu0 %v577
  %625 = vmatprep.subr.bf16.mxu0 0
  %626 = vmatpush1.bf16.msra.mxu0 %v578
  %627 = vmatprep.mubr.bf16.mxu0 %v491
  %628 = vmatmul.mubr.bf16.gmra.mrb[0].mxu0 %v475
  %v629 = vpop.f32.mrb[0].mxu0
  %v630 = vadd.f32 0.0, %v629
  %v631 = vpop.f32.mrb[0].mxu0
  %v632 = vpop.f32.mrb[0].mxu0
  %v633 = vadd.f32 0.0, %v632
  %v634 = vpop.f32.mrb[0].mxu0
  %635 = vmatprep.mubr.bf16.mxu0 %v492
  %636 = vmatmul.mubr.bf16.gmra.mrb[0].mxu0 %v476
  %v637 = vpop.f32.mrb[0].mxu0
  %v638 = vadd.f32 0.0, %v637
  %v639 = vpop.f32.mrb[0].mxu0
  %v640 = vpop.f32.mrb[0].mxu0
  %v641 = vadd.f32 0.0, %v640
  %v642 = vpop.f32.mrb[0].mxu0
  %643 = vmatprep.mubr.bf16.mxu0 %v493
  %644 = vmatmul.mubr.bf16.gmra.mrb[0].mxu0 %v477
  %v645 = vpop.f32.mrb[0].mxu0
  %v646 = vadd.f32 0.0, %v645
  %v647 = vpop.f32.mrb[0].mxu0
  %v648 = vpop.f32.mrb[0].mxu0
  %v649 = vadd.f32 0.0, %v648
  %v650 = vpop.f32.mrb[0].mxu0
  %651 = vmatprep.mubr.bf16.mxu0 %v494
  %652 = vmatmul.mubr.bf16.gmra.mrb[0].mxu0 %v478
  %v653 = vpop.f32.mrb[0].mxu0
  %v654 = vadd.f32 0.0, %v653
  %v655 = vpop.f32.mrb[0].mxu0
  %v656 = vpop.f32.mrb[0].mxu0
  %v657 = vadd.f32 0.0, %v656
  %v658 = vpop.f32.mrb[0].mxu0
  %659 = vmatprep.mubr.bf16.mxu0 %v495
  %660 = vmatmul.mubr.bf16.gmra.mrb[0].mxu0 %v479
  %v661 = vpop.f32.mrb[0].mxu0
  %v662 = vadd.f32 0.0, %v661
  %v663 = vpop.f32.mrb[0].mxu0
  %v664 = vpop.f32.mrb[0].mxu0
  %v665 = vadd.f32 0.0, %v664
  %v666 = vpop.f32.mrb[0].mxu0
  %667 = vmatprep.mubr.bf16.mxu0 %v496
  %668 = vmatmul.mubr.bf16.gmra.mrb[0].mxu0 %v480
  %v669 = vpop.f32.mrb[0].mxu0
  %v670 = vadd.f32 0.0, %v669
  %v671 = vpop.f32.mrb[0].mxu0
  %v672 = vpop.f32.mrb[0].mxu0
  %v673 = vadd.f32 0.0, %v672
  %v674 = vpop.f32.mrb[0].mxu0
  %675 = vmatprep.mubr.bf16.mxu0 %v497
  %676 = vmatmul.mubr.bf16.gmra.mrb[0].mxu0 %v481
  %v677 = vpop.f32.mrb[0].mxu0
  %v678 = vadd.f32 0.0, %v677
  %v679 = vpop.f32.mrb[0].mxu0
  %v680 = vpop.f32.mrb[0].mxu0
  %v681 = vadd.f32 0.0, %v680
  %v682 = vpop.f32.mrb[0].mxu0
  %683 = vmatprep.mubr.bf16.mxu0 %v498
  %684 = vmatmul.mubr.bf16.gmra.mrb[0].mxu0 %v482
  %v685 = vpop.f32.mrb[0].mxu0
  %v686 = vadd.f32 0.0, %v685
  %v687 = vpop.f32.mrb[0].mxu0
  %v688 = vpop.f32.mrb[0].mxu0
  %v689 = vadd.f32 0.0, %v688
  %v690 = vpop.f32.mrb[0].mxu0
  %691 = vdwg.mxu0
  %692 = vst.msk [vmem:[%s4] sm:$0xff] %vm105, %v630
  %693 = vst.msk [vmem:[%s4 + $0x8] sm:$0xff] %vm105, %v633
  %694 = vst.msk [vmem:[%s4 + $0x10] sm:$0xff] %vm105, %v638
  %695 = vst.msk [vmem:[%s4 + $0x18] sm:$0xff] %vm105, %v641
  %696 = vst.msk [vmem:[%s4 + $0x20] sm:$0xff] %vm105, %v646
  %697 = vst.msk [vmem:[%s4 + $0x28] sm:$0xff] %vm105, %v649
  %698 = vst.msk [vmem:[%s4 + $0x30] sm:$0xff] %vm105, %v654
  %699 = vst.msk [vmem:[%s4 + $0x38] sm:$0xff] %vm105, %v657
  %700 = vst.msk [vmem:[%s4 + $0x40] sm:$0xff] %vm105, %v662
  %701 = vst.msk [vmem:[%s4 + $0x48] sm:$0xff] %vm105, %v665
  %702 = vst.msk [vmem:[%s4 + $0x50] sm:$0xff] %vm105, %v670
  %703 = vst.msk [vmem:[%s4 + $0x58] sm:$0xff] %vm105, %v673
  %704 = vst.msk [vmem:[%s4 + $0x60] sm:$0xff] %vm105, %v678
  %705 = vst.msk [vmem:[%s4 + $0x68] sm:$0xff] %vm105, %v681
  %706 = vst.msk [vmem:[%s4 + $0x70] sm:$0xff] %vm105, %v686
  %707 = vst.msk [vmem:[%s4 + $0x78] sm:$0xff] %vm105, %v689
  // Predicated region
  $region18: #{tpu_custom_call.1} parent=0 // pred_check
    _
  $region19: #{tpu_custom_call.1} parent=0 // pred_check_branch
    %709 = sbr.rel (0) target = $region21
  $region20: #{tpu_custom_call.1} parent=0 // pred_region
    _
  $region21: #{tpu_custom_call.1} parent=0 // pred_fallthru
    _
  // Predicated region
  $region22: #{tpu_custom_call.1} parent=0 // pred_check
    _
  $region23: #{tpu_custom_call.1} parent=0 // pred_check_branch
    %711 = sbr.rel (0) target = $region25
  $region24: #{tpu_custom_call.1} parent=0 // pred_region
    _
  $region25: #{tpu_custom_call.1} parent=0 // pred_fallthru
    _

</llo_original>
